<compile_context>
chip_gen: v5e
topology: v5e:2x2
jax: 0.10.0
libtpu: 0.0.40
codegen_flags: <defaults>
</compile_context>

<pallas_src>
import functools

import jax
import jax.numpy as jnp
from jax.experimental import pallas as pl
from jax.experimental.pallas import tpu as pltpu  # noqa: F401  (kept for CompilerParams if needed)


_LANE = 128     # lane width: pad feature dims to this
_SUBLANE = 8    # sublane width: pad batch to this
_NEG_SLOPE = 0.01  # nn.LeakyReLU default


def _round_up(n, m):
    return ((n + m - 1) // m) * m


def _fused_encoder_kernel(*refs, n_layers: int):
    # refs = (x_ref, w0_ref, b0_ref, w1_ref, b1_ref, ..., o_ref)
    x_ref = refs[0]
    o_ref = refs[-1]

    h = x_ref[...].astype(jnp.float32)
    for layer in range(n_layers):
        w_ref = refs[1 + 2 * layer]
        b_ref = refs[2 + 2 * layer]
        # MXU matmul with f32 accumulate; bias broadcast (1, Out) over batch.
        h = jnp.dot(h, w_ref[...], preferred_element_type=jnp.float32) + b_ref[...]
        if layer != n_layers - 1:
            h = jnp.where(h > 0, h, jnp.float32(_NEG_SLOPE) * h)
    o_ref[...] = h.astype(o_ref.dtype)


def encoder_forward(x, params):
    """Fused forward pass: Linear -> LeakyReLU -> ... -> Linear in one pallas_call.

    x:      (batch, dims[0]) float32
    params: list of (w, b) with w: (in, out), b: (1, out)  (unpadded, true sizes)
    """
    batch, in_dim = x.shape
    n_layers = len(params)
    dims = [in_dim] + [w.shape[1] for (w, _) in params]

    # Padded (lane-dense) sizes.
    dims_p = [_round_up(d, _LANE) for d in dims]
    batch_p = _round_up(batch, _SUBLANE)

    # Zero-pad input and parameters. Zero padding is semantics-preserving:
    # padded input columns hit zero weight rows, padded output columns get
    # zero weight columns + zero bias, and LeakyReLU(0) == 0.
    x_p = jnp.zeros((batch_p, dims_p[0]), jnp.float32).at[:batch, :in_dim].set(x)

    inputs = [x_p]
    in_specs = [pl.BlockSpec((batch_p, dims_p[0]), lambda: (0, 0))]
    for i, (w, b) in enumerate(params):
        w_p = (jnp.zeros((dims_p[i], dims_p[i + 1]), jnp.float32)
               .at[:dims[i], :dims[i + 1]].set(w))
        b_p = (jnp.zeros((1, dims_p[i + 1]), jnp.float32)
               .at[:, :dims[i + 1]].set(b.reshape(1, -1)))
        inputs += [w_p, b_p]
        in_specs += [
            pl.BlockSpec((dims_p[i], dims_p[i + 1]), lambda: (0, 0)),
            pl.BlockSpec((1, dims_p[i + 1]), lambda: (0, 0)),
        ]

    kernel = functools.partial(_fused_encoder_kernel, n_layers=n_layers)

    out_p = pl.pallas_call(
        kernel,
        out_shape=jax.ShapeDtypeStruct((batch_p, dims_p[-1]), jnp.float32),
        in_specs=in_specs,
        out_specs=pl.BlockSpec((batch_p, dims_p[-1]), lambda: (0, 0)),
        # No grid: single fused block — at these sizes the whole problem fits
        # comfortably in VMEM and any grid/pipelining would be pure overhead.
    )(*inputs)

    # Slice back to the true output shape.
    return out_p[:batch, :dims[-1]]


def init_encoder_params(key, dims):
    """Deterministic init mimicking torch.nn.Linear default U(-1/sqrt(in), 1/sqrt(in))."""
    params = []
    for i in range(len(dims) - 1):
        key, kw, kb = jax.random.split(key, 3)
        bound = 1.0 / jnp.sqrt(jnp.float32(dims[i]))
        w = jax.random.uniform(kw, (dims[i], dims[i + 1]), jnp.float32,
                               minval=-bound, maxval=bound)
        b = jax.random.uniform(kb, (1, dims[i + 1]), jnp.float32,
                               minval=-bound, maxval=bound)
        params.append((w, b))
    return params


def encoder_reference(x, params):
    """Plain-JAX reference for correctness check."""
    n_layers = len(params)
    h = x
    for idx, (w, b) in enumerate(params):
        h = h @ w + b[0]
        if idx != n_layers - 1:
            h = jnp.where(h > 0, h, _NEG_SLOPE * h)
    return h


if __name__ == "__main__":
    key = jax.random.PRNGKey(0)
    dims = [32, 64, 48, 16]   # Encoder(dims): 3 Linear layers, LeakyReLU after first two
    batch = 8

    key, kx, kp = jax.random.split(key, 3)
    x = jax.random.normal(kx, (batch, dims[0]), jnp.float32)
    params = init_encoder_params(kp, dims)

    out = encoder_forward(x, params)
    out = jax.block_until_ready(out)

    ref = encoder_reference(x, params)
    assert out.shape == (batch, dims[-1])
    assert jnp.allclose(out, ref, atol=1e-5, rtol=1e-5)

    print("KERNEL_OK")
</pallas_src>

<mosaic_0001>
module attributes {stable_mosaic.version = 11 : i64} {
  func.func @_fused_encoder_kernel(%arg0: memref<8x128xf32, #tpu.memory_space<vmem>>, %arg1: memref<128x128xf32, #tpu.memory_space<vmem>>, %arg2: memref<1x128xf32, #tpu.memory_space<vmem>>, %arg3: memref<128x128xf32, #tpu.memory_space<vmem>>, %arg4: memref<1x128xf32, #tpu.memory_space<vmem>>, %arg5: memref<128x128xf32, #tpu.memory_space<vmem>>, %arg6: memref<1x128xf32, #tpu.memory_space<vmem>>, %arg7: memref<8x128xf32, #tpu.memory_space<vmem>>) attributes {dimension_semantics = [], scalar_prefetch = 0 : i64, scratch_operands = 0 : i64, tpu.core_type = #tpu.core_type<tc>} {
    %c0 = arith.constant 0 : index
    %c0_0 = arith.constant 0 : index
    %0 = vector.load %arg0[%c0, %c0_0] : memref<8x128xf32, #tpu.memory_space<vmem>>, vector<8x128xf32>
    %c0_1 = arith.constant 0 : index
    %c0_2 = arith.constant 0 : index
    %1 = vector.load %arg1[%c0_1, %c0_2] : memref<128x128xf32, #tpu.memory_space<vmem>>, vector<128x128xf32>
    %cst = arith.constant dense<0.000000e+00> : vector<8x128xf32>
    %2 = tpu.matmul %0, %1, %cst {dimension_numbers = #tpu.dot_dimension_numbers<[1], [0], [0], [1], [0, 0, 1, 1], [], []>} : vector<8x128xf32>, vector<128x128xf32>, vector<8x128xf32> -> vector<8x128xf32>
    %c0_3 = arith.constant 0 : index
    %c0_4 = arith.constant 0 : index
    %3 = vector.load %arg2[%c0_3, %c0_4] : memref<1x128xf32, #tpu.memory_space<vmem>>, vector<1x128xf32>
    %4 = vector.broadcast %3 : vector<1x128xf32> to vector<8x128xf32>
    %5 = arith.addf %2, %4 : vector<8x128xf32>
    %cst_5 = arith.constant 0.000000e+00 : f32
    %6 = vector.broadcast %cst_5 : f32 to vector<8x128xf32>
    %7 = arith.cmpf ogt, %5, %6 : vector<8x128xf32>
    %cst_6 = arith.constant 0.00999999977 : f32
    %8 = vector.broadcast %cst_6 : f32 to vector<8x128xf32>
    %9 = arith.mulf %8, %5 : vector<8x128xf32>
    %10 = arith.select %7, %5, %9 : vector<8x128xi1>, vector<8x128xf32>
    %c0_7 = arith.constant 0 : index
    %c0_8 = arith.constant 0 : index
    %11 = vector.load %arg3[%c0_7, %c0_8] : memref<128x128xf32, #tpu.memory_space<vmem>>, vector<128x128xf32>
    %cst_9 = arith.constant dense<0.000000e+00> : vector<8x128xf32>
    %12 = tpu.matmul %10, %11, %cst_9 {dimension_numbers = #tpu.dot_dimension_numbers<[1], [0], [0], [1], [0, 0, 1, 1], [], []>} : vector<8x128xf32>, vector<128x128xf32>, vector<8x128xf32> -> vector<8x128xf32>
    %c0_10 = arith.constant 0 : index
    %c0_11 = arith.constant 0 : index
    %13 = vector.load %arg4[%c0_10, %c0_11] : memref<1x128xf32, #tpu.memory_space<vmem>>, vector<1x128xf32>
    %14 = vector.broadcast %13 : vector<1x128xf32> to vector<8x128xf32>
    %15 = arith.addf %12, %14 : vector<8x128xf32>
    %cst_12 = arith.constant 0.000000e+00 : f32
    %16 = vector.broadcast %cst_12 : f32 to vector<8x128xf32>
    %17 = arith.cmpf ogt, %15, %16 : vector<8x128xf32>
    %cst_13 = arith.constant 0.00999999977 : f32
    %18 = vector.broadcast %cst_13 : f32 to vector<8x128xf32>
    %19 = arith.mulf %18, %15 : vector<8x128xf32>
    %20 = arith.select %17, %15, %19 : vector<8x128xi1>, vector<8x128xf32>
    %c0_14 = arith.constant 0 : index
    %c0_15 = arith.constant 0 : index
    %21 = vector.load %arg5[%c0_14, %c0_15] : memref<128x128xf32, #tpu.memory_space<vmem>>, vector<128x128xf32>
    %cst_16 = arith.constant dense<0.000000e+00> : vector<8x128xf32>
    %22 = tpu.matmul %20, %21, %cst_16 {dimension_numbers = #tpu.dot_dimension_numbers<[1], [0], [0], [1], [0, 0, 1, 1], [], []>} : vector<8x128xf32>, vector<128x128xf32>, vector<8x128xf32> -> vector<8x128xf32>
    %c0_17 = arith.constant 0 : index
    %c0_18 = arith.constant 0 : index
    %23 = vector.load %arg6[%c0_17, %c0_18] : memref<1x128xf32, #tpu.memory_space<vmem>>, vector<1x128xf32>
    %24 = vector.broadcast %23 : vector<1x128xf32> to vector<8x128xf32>
    %25 = arith.addf %22, %24 : vector<8x128xf32>
    %c0_19 = arith.constant 0 : index
    %c0_20 = arith.constant 0 : index
    %26 = vector.load %arg7[%c0_19, %c0_20] : memref<8x128xf32, #tpu.memory_space<vmem>>, vector<8x128xf32>
    tpu.vector_store %arg7[%c0_19, %c0_20], %25 {strides = array<i32>} : memref<8x128xf32, #tpu.memory_space<vmem>>, vector<8x128xf32>,
    return
  }
}

</mosaic_0001>

<llo_original>
// kernel: tpu_custom_call.1
$region0: #{tpu_custom_call.1}
  #allocation0 [shape = 'u32[]', space=smem, size = 0x4, offset = 0x4, fixed_abs, tag = 'smem constant byte address 0x4 - core index']
  #allocation1 [shape = 'u32[72,128]{1,0:T(1,128)}', space=vmem, size = 0x9000, scoped, tag = 'internal scratch']
  %s0 = inlined_call_operand.hbm [shape: f32[8,128], index: 0, kind: input, shape index: {}]
  %s1 = inlined_call_operand.hbm [shape: f32[128,128], index: 1, kind: input, shape index: {}]
  %s2 = inlined_call_operand.vmem [shape: f32[1,128], index: 2, kind: input, shape index: {}]
  %s3 = inlined_call_operand.hbm [shape: f32[128,128], index: 3, kind: input, shape index: {}]
  %s4 = inlined_call_operand.vmem [shape: f32[1,128], index: 4, kind: input, shape index: {}]
  %s5 = inlined_call_operand.hbm [shape: f32[128,128], index: 5, kind: input, shape index: {}]
  %s6 = inlined_call_operand.vmem [shape: f32[1,128], index: 6, kind: input, shape index: {}]
  %s7 = inlined_call_operand.hbm [shape: f32[8,128], index: 7, kind: output, shape index: {}]
  %s8 = sld [smem:[#allocation0]]
  $region54: #{tpu_custom_call.1} parent=0
    _
  %s10 = ssub.s32 1, %s8
  %s11 = scalar_select 0, %s10, %s8
  $region1: #{tpu_custom_call.1} parent=0
    #allocation2 [shape = 'u8[4096]{0}', space=vmem, size = 0x1000, scoped, tag = 'input window, operand 0, single buffered']
    #allocation3 [shape = 's32[1]{0}', space=sflag, size = 0x4, scoped, tag = 'scoped memory for tpu_custom_call.1']
    #allocation4 [shape = 's32[1]{0}', space=sflag, size = 0x4, scoped, tag = 'scoped memory for tpu_custom_call.1']
    #allocation5 [shape = 'u8[65536]{0}', space=vmem, size = 0x10000, scoped, tag = 'input window, operand 1, single buffered']
    #allocation6 [shape = 's32[1]{0}', space=sflag, size = 0x4, scoped, tag = 'scoped memory for tpu_custom_call.1']
    #allocation7 [shape = 'u8[65536]{0}', space=vmem, size = 0x10000, scoped, tag = 'input window, operand 3, single buffered']
    #allocation8 [shape = 'u8[65536]{0}', space=vmem, size = 0x10000, scoped, tag = 'input window, operand 5, single buffered']
    #allocation9 [shape = 's32[1]{0}', space=sflag, size = 0x4, scoped, tag = 'scoped memory for tpu_custom_call.1']
    #allocation10 [shape = 'u8[4096]{0}', space=vmem, size = 0x1000, scoped, tag = 'output window, operand 0, single buffered']
    %12 = vsyncpa [#allocation3], 0
    %13 = vsyncpa [#allocation6], 0
    %14 = vsyncpa [#allocation9], 0
    %15 = vsyncpa [#allocation4], 0
    // Predicated region
    $region2: #{tpu_custom_call.1} parent=1 // pred_check
      _
    $region3: #{tpu_custom_call.1} parent=1 // pred_check_branch
      %17 = sbr.rel (0) target = $region5
    $region4: #{tpu_custom_call.1} parent=1 // pred_region
      %19 = vsyncadd [#allocation3], 0
      %s21 = sshll.u32 %s0, 4
      %s22 = int_to_ptr.hbm [resolvable:$true] %s21
      %s23 = sshll.u32 [#allocation2], 4
      %s24 = int_to_ptr.vmem [resolvable:$true] %s23
      %26 = dma.hbm_to_vmem [thread:$0]  %s22, 128, %s24, [#allocation3]
    $region5: #{tpu_custom_call.1} parent=1 // pred_fallthru
      _
    // Predicated region
    $region6: #{tpu_custom_call.1} parent=1 // pred_check
      _
    $region7: #{tpu_custom_call.1} parent=1 // pred_check_branch
      %28 = sbr.rel (0) target = $region9
    $region8: #{tpu_custom_call.1} parent=1 // pred_region
      %30 = vsyncadd [#allocation6], 0
      %s31 = sshll.u32 %s1, 4
      %s32 = int_to_ptr.hbm [resolvable:$true] %s31
      %s33 = sshll.u32 [#allocation5], 4
      %s34 = int_to_ptr.vmem [resolvable:$true] %s33
      %39 = dma.hbm_to_vmem [thread:$0]  %s32, 2048, %s34, [#allocation6], 128, 128, 8
    $region9: #{tpu_custom_call.1} parent=1 // pred_fallthru
      _
    // Predicated region
    $region10: #{tpu_custom_call.1} parent=1 // pred_check
      _
    $region11: #{tpu_custom_call.1} parent=1 // pred_check_branch
      %41 = sbr.rel (0) target = $region13
    $region12: #{tpu_custom_call.1} parent=1 // pred_region
      _
    $region13: #{tpu_custom_call.1} parent=1 // pred_fallthru
      _
    // Predicated region
    $region14: #{tpu_custom_call.1} parent=1 // pred_check
      _
    $region15: #{tpu_custom_call.1} parent=1 // pred_check_branch
      %43 = sbr.rel (0) target = $region17
    $region16: #{tpu_custom_call.1} parent=1 // pred_region
      %45 = vsyncadd [#allocation6], 0
      %s46 = sshll.u32 %s3, 4
      %s47 = int_to_ptr.hbm [resolvable:$true] %s46
      %s48 = sshll.u32 [#allocation7], 4
      %s49 = int_to_ptr.vmem [resolvable:$true] %s48
      %54 = dma.hbm_to_vmem [thread:$0]  %s47, 2048, %s49, [#allocation6], 128, 128, 8
    $region17: #{tpu_custom_call.1} parent=1 // pred_fallthru
      _
    // Predicated region
    $region18: #{tpu_custom_call.1} parent=1 // pred_check
      _
    $region19: #{tpu_custom_call.1} parent=1 // pred_check_branch
      %56 = sbr.rel (0) target = $region21
    $region20: #{tpu_custom_call.1} parent=1 // pred_region
      _
    $region21: #{tpu_custom_call.1} parent=1 // pred_fallthru
      _
    // Predicated region
    $region22: #{tpu_custom_call.1} parent=1 // pred_check
      _
    $region23: #{tpu_custom_call.1} parent=1 // pred_check_branch
      %58 = sbr.rel (0) target = $region25
    $region24: #{tpu_custom_call.1} parent=1 // pred_region
      %60 = vsyncadd [#allocation9], 0
      %s61 = sshll.u32 %s5, 4
      %s62 = int_to_ptr.hbm [resolvable:$true] %s61
      %s63 = sshll.u32 [#allocation8], 4
      %s64 = int_to_ptr.vmem [resolvable:$true] %s63
      %69 = dma.hbm_to_vmem [thread:$0]  %s62, 2048, %s64, [#allocation9], 128, 128, 8
    $region25: #{tpu_custom_call.1} parent=1 // pred_fallthru
      _
    // Predicated region
    $region26: #{tpu_custom_call.1} parent=1 // pred_check
      _
    $region27: #{tpu_custom_call.1} parent=1 // pred_check_branch
      %71 = sbr.rel (0) target = $region29
    $region28: #{tpu_custom_call.1} parent=1 // pred_region
      _
    $region29: #{tpu_custom_call.1} parent=1 // pred_fallthru
      _
    // Predicated region
    $region30: #{tpu_custom_call.1} parent=1 // pred_check
      _
    $region31: #{tpu_custom_call.1} parent=1 // pred_check_branch
      %73 = sbr.rel (0) target = $region33
    $region32: #{tpu_custom_call.1} parent=1 // pred_region
      %75 = dma.done [#allocation3], 128
    $region33: #{tpu_custom_call.1} parent=1 // pred_fallthru
      _
    // Predicated region
    $region34: #{tpu_custom_call.1} parent=1 // pred_check
      _
    $region35: #{tpu_custom_call.1} parent=1 // pred_check_branch
      %77 = sbr.rel (0) target = $region37
    $region36: #{tpu_custom_call.1} parent=1 // pred_region
      %79 = dma.done [#allocation6], 2048
    $region37: #{tpu_custom_call.1} parent=1 // pred_fallthru
      _
    // Predicated region
    $region38: #{tpu_custom_call.1} parent=1 // pred_check
      _
    $region39: #{tpu_custom_call.1} parent=1 // pred_check_branch
      %81 = sbr.rel (0) target = $region41
    $region40: #{tpu_custom_call.1} parent=1 // pred_region
      %83 = dma.done [#allocation6], 2048
    $region41: #{tpu_custom_call.1} parent=1 // pred_fallthru
      _
    // Predicated region
    $region42: #{tpu_custom_call.1} parent=1 // pred_check
      _
    $region43: #{tpu_custom_call.1} parent=1 // pred_check_branch
      %85 = sbr.rel (0) target = $region45
    $region44: #{tpu_custom_call.1} parent=1 // pred_region
      %87 = dma.done [#allocation9], 2048
    $region45: #{tpu_custom_call.1} parent=1 // pred_fallthru
      _
    %v88 = vld [vmem:[#allocation2] sm:$0xff]
    %v89 = vld [vmem:[#allocation5] sm:$0xff]
    %v90 = vld [vmem:[#allocation5 + $0x8] sm:$0xff]
    %v91 = vld [vmem:[#allocation5 + $0x10] sm:$0xff]
    %v92 = vld [vmem:[#allocation5 + $0x18] sm:$0xff]
    %v93 = vld [vmem:[#allocation5 + $0x20] sm:$0xff]
    %v94 = vld [vmem:[#allocation5 + $0x28] sm:$0xff]
    %v95 = vld [vmem:[#allocation5 + $0x30] sm:$0xff]
    %v96 = vld [vmem:[#allocation5 + $0x38] sm:$0xff]
    %v97 = vld [vmem:[#allocation5 + $0x40] sm:$0xff]
    %v98 = vld [vmem:[#allocation5 + $0x48] sm:$0xff]
    %v99 = vld [vmem:[#allocation5 + $0x50] sm:$0xff]
    %v100 = vld [vmem:[#allocation5 + $0x58] sm:$0xff]
    %v101 = vld [vmem:[#allocation5 + $0x60] sm:$0xff]
    %v102 = vld [vmem:[#allocation5 + $0x68] sm:$0xff]
    %v103 = vld [vmem:[#allocation5 + $0x70] sm:$0xff]
    %v104 = vld [vmem:[#allocation5 + $0x78] sm:$0xff]
    %v105 = vld [vmem:[%s2] sm:$0x1]
    %v107 = vperm.slane %v105, 0
    %109 = vmatpush.msra.mxu0 %v104
    %110 = vmatpush.msra.mxu0 %v103
    %111 = vmatpush.msra.mxu0 %v102
    %112 = vmatpush.msra.mxu0 %v101
    %113 = vmatpush.msra.mxu0 %v100
    %114 = vmatpush.msra.mxu0 %v99
    %115 = vmatpush.msra.mxu0 %v98
    %116 = vmatpush.msra.mxu0 %v97
    %117 = vmatpush.msra.mxu0 %v96
    %118 = vmatpush.msra.mxu0 %v95
    %119 = vmatpush.msra.mxu0 %v94
    %120 = vmatpush.msra.mxu0 %v93
    %121 = vmatpush.msra.mxu0 %v92
    %122 = vmatpush.msra.mxu0 %v91
    %123 = vmatpush.msra.mxu0 %v90
    %124 = vmatpush.msra.mxu0 %v89
    %125 = vmatmul.f32.gmra.mxu0 %v88
    %v126 = vpop.f32.mrf.mxu0
    %v127 = vadd.f32 %v107, %v126
    %128 = vdwg.mxu0
    %vm129 = vcmp.gt.f32.partialorder %v127, 0.0
    %v130 = vmul.f32 %v127, 0.01
    %v131 = vsel %vm129, %v127, %v130
    %v132 = vld [vmem:[#allocation7] sm:$0xff]
    %v133 = vld [vmem:[#allocation7 + $0x8] sm:$0xff]
    %v134 = vld [vmem:[#allocation7 + $0x10] sm:$0xff]
    %v135 = vld [vmem:[#allocation7 + $0x18] sm:$0xff]
    %v136 = vld [vmem:[#allocation7 + $0x20] sm:$0xff]
    %v137 = vld [vmem:[#allocation7 + $0x28] sm:$0xff]
    %v138 = vld [vmem:[#allocation7 + $0x30] sm:$0xff]
    %v139 = vld [vmem:[#allocation7 + $0x38] sm:$0xff]
    %v140 = vld [vmem:[#allocation7 + $0x40] sm:$0xff]
    %v141 = vld [vmem:[#allocation7 + $0x48] sm:$0xff]
    %v142 = vld [vmem:[#allocation7 + $0x50] sm:$0xff]
    %v143 = vld [vmem:[#allocation7 + $0x58] sm:$0xff]
    %v144 = vld [vmem:[#allocation7 + $0x60] sm:$0xff]
    %v145 = vld [vmem:[#allocation7 + $0x68] sm:$0xff]
    %v146 = vld [vmem:[#allocation7 + $0x70] sm:$0xff]
    %v147 = vld [vmem:[#allocation7 + $0x78] sm:$0xff]
    %v148 = vld [vmem:[%s4] sm:$0x1]
    %v150 = vperm.slane %v148, 0
    %152 = vmatpush.msra.mxu0 %v147
    %153 = vmatpush.msra.mxu0 %v146
    %154 = vmatpush.msra.mxu0 %v145
    %155 = vmatpush.msra.mxu0 %v144
    %156 = vmatpush.msra.mxu0 %v143
    %157 = vmatpush.msra.mxu0 %v142
    %158 = vmatpush.msra.mxu0 %v141
    %159 = vmatpush.msra.mxu0 %v140
    %160 = vmatpush.msra.mxu0 %v139
    %161 = vmatpush.msra.mxu0 %v138
    %162 = vmatpush.msra.mxu0 %v137
    %163 = vmatpush.msra.mxu0 %v136
    %164 = vmatpush.msra.mxu0 %v135
    %165 = vmatpush.msra.mxu0 %v134
    %166 = vmatpush.msra.mxu0 %v133
    %167 = vmatpush.msra.mxu0 %v132
    %168 = vmatmul.f32.gmra.mxu0 %v131
    %v169 = vpop.f32.mrf.mxu0
    %v170 = vadd.f32 %v150, %v169
    %171 = vdwg.mxu0
    %vm172 = vcmp.gt.f32.partialorder %v170, 0.0
    %v173 = vmul.f32 %v170, 0.01
    %v174 = vsel %vm172, %v170, %v173
    %v175 = vld [vmem:[#allocation8] sm:$0xff]
    %v176 = vld [vmem:[#allocation8 + $0x8] sm:$0xff]
    %v177 = vld [vmem:[#allocation8 + $0x10] sm:$0xff]
    %v178 = vld [vmem:[#allocation8 + $0x18] sm:$0xff]
    %v179 = vld [vmem:[#allocation8 + $0x20] sm:$0xff]
    %v180 = vld [vmem:[#allocation8 + $0x28] sm:$0xff]
    %v181 = vld [vmem:[#allocation8 + $0x30] sm:$0xff]
    %v182 = vld [vmem:[#allocation8 + $0x38] sm:$0xff]
    %v183 = vld [vmem:[#allocation8 + $0x40] sm:$0xff]
    %v184 = vld [vmem:[#allocation8 + $0x48] sm:$0xff]
    %v185 = vld [vmem:[#allocation8 + $0x50] sm:$0xff]
    %v186 = vld [vmem:[#allocation8 + $0x58] sm:$0xff]
    %v187 = vld [vmem:[#allocation8 + $0x60] sm:$0xff]
    %v188 = vld [vmem:[#allocation8 + $0x68] sm:$0xff]
    %v189 = vld [vmem:[#allocation8 + $0x70] sm:$0xff]
    %v190 = vld [vmem:[#allocation8 + $0x78] sm:$0xff]
    %v191 = vld [vmem:[%s6] sm:$0x1]
    %v193 = vperm.slane %v191, 0
    %195 = vmatpush.msra.mxu0 %v190
    %196 = vmatpush.msra.mxu0 %v189
    %197 = vmatpush.msra.mxu0 %v188
    %198 = vmatpush.msra.mxu0 %v187
    %199 = vmatpush.msra.mxu0 %v186
    %200 = vmatpush.msra.mxu0 %v185
    %201 = vmatpush.msra.mxu0 %v184
    %202 = vmatpush.msra.mxu0 %v183
    %203 = vmatpush.msra.mxu0 %v182
    %204 = vmatpush.msra.mxu0 %v181
    %205 = vmatpush.msra.mxu0 %v180
    %206 = vmatpush.msra.mxu0 %v179
    %207 = vmatpush.msra.mxu0 %v178
    %208 = vmatpush.msra.mxu0 %v177
    %209 = vmatpush.msra.mxu0 %v176
    %210 = vmatpush.msra.mxu0 %v175
    %211 = vmatmul.f32.gmra.mxu0 %v174
    %v212 = vpop.f32.mrf.mxu0
    %v213 = vadd.f32 %v193, %v212
    %214 = vdwg.mxu0
    %215 = vst [vmem:[#allocation10] sm:$0xff] %v213
    // Predicated region
    $region46: #{tpu_custom_call.1} parent=1 // pred_check
      _
    $region47: #{tpu_custom_call.1} parent=1 // pred_check_branch
      %217 = sbr.rel (0) target = $region49
    $region48: #{tpu_custom_call.1} parent=1 // pred_region
      %219 = vsyncadd [#allocation4], 0
      %s221 = sshll.u32 [#allocation10], 4
      %s222 = int_to_ptr.vmem [resolvable:$true] %s221
      %s223 = sshll.u32 %s7, 4
      %s224 = int_to_ptr.hbm [resolvable:$true] %s223
      %226 = dma.vmem_to_hbm [thread:$0]  %s222, 128, %s224, [#allocation4]
    $region49: #{tpu_custom_call.1} parent=1 // pred_fallthru
      _
    // Predicated region
    $region50: #{tpu_custom_call.1} parent=1 // pred_check
      _
    $region51: #{tpu_custom_call.1} parent=1 // pred_check_branch
      %228 = sbr.rel (0) target = $region53
    $region52: #{tpu_custom_call.1} parent=1 // pred_region
      %230 = dma.done [#allocation4], 128
    $region53: #{tpu_custom_call.1} parent=1 // pred_fallthru
      _
    %231 = vsyncpa [#allocation3], 1
    %232 = vsyncpa [#allocation6], 1
    %233 = vsyncpa [#allocation9], 1
    %234 = vsyncpa [#allocation4], 1

</llo_original>
